<compile_context>
chip_gen: v6e
topology: v6e:2x2x1
jax: 0.10.0
libtpu: 0.0.40
codegen_flags: <defaults>
</compile_context>

<pallas_src>
import math
from functools import partial

import jax
import jax.numpy as jnp
from jax import lax
from jax.experimental import pallas as pl
from jax.experimental.pallas import tpu as pltpu


# Fused temporal table rows: [year(10) | month(13) | day(32) | weekday(7)].
# x_mark columns (matches the PyTorch module): 0=year, 1=month, 2=day, 3=weekday.
_FIELD_SIZES = (10, 13, 32, 7)
_FIELD_OFFSETS = (0, 10, 23, 55)
_N_TABLE_ROWS = sum(_FIELD_SIZES)  # 62


# ---------------------------------------------------------------------------
# Pallas kernel
# ---------------------------------------------------------------------------
def _data_embedding_kernel(x_ref, m_ref, w_ref, pe_ref, o_ref, *, seq_len):
    # One grid step processes rows = block_batch * seq_len flattened (batch, time) rows.
    #   x_ref  : (rows, c_in)  f32    value series (batch-major, time-minor rows)
    #   m_ref  : (rows, 4)     int32  temporal marks with per-field offsets pre-added
    #   w_ref  : (3*c_in + n_rows, d_model)  fused [W_prev; W_center; W_next; tables]
    #   pe_ref : (rows, d_model)      positional embedding tiled over the folded batch
    #   o_ref  : (rows, d_model)      output block
    x = x_ref[...]
    rows, c_in = x.shape
    L = seq_len
    n_rows = w_ref.shape[0] - 3 * c_in

    # Circular 3-tap neighbours, per sequence, on the flattened row axis:
    # 2-D sublane rolls (XLU, ~free) + a boundary fix at sequence edges.
    if L > 1:
        prev_flat = pltpu.roll(x, 1, axis=0)                # x[(i-1)   mod rows]
        next_flat = pltpu.roll(x, rows - 1, axis=0)         # x[(i+1)   mod rows]
        prev_wrap = pltpu.roll(x, rows - (L - 1), axis=0)   # x[(i+L-1) mod rows]
        next_wrap = pltpu.roll(x, L - 1, axis=0)            # x[(i-L+1) mod rows]
        t_in_seq = lax.broadcasted_iota(jnp.int32, (rows, c_in), 0) % L
        x_prev = jnp.where(t_in_seq == 0, prev_wrap, prev_flat)
        x_next = jnp.where(t_in_seq == L - 1, next_wrap, next_flat)
    else:
        x_prev = x
        x_next = x

    # Temporal embedding: summed one-hot rows (table offsets already added upstream).
    idx = m_ref[...]                                         # (rows, 4) int32
    row_iota = lax.broadcasted_iota(jnp.int32, (rows, n_rows), 1)
    one_hot = jnp.zeros((rows, n_rows), jnp.float32)
    for k in range(idx.shape[1]):                            # static 4-way unroll
        one_hot = one_hot + (idx[:, k:k + 1] == row_iota).astype(jnp.float32)

    # Single fused MXU contraction (conv taps + temporal lookup), f32 accumulation.
    cdt = w_ref.dtype
    x_big = jnp.concatenate(
        [x_prev.astype(cdt), x.astype(cdt), x_next.astype(cdt), one_hot.astype(cdt)],
        axis=-1)                                             # (rows, 3*c_in + n_rows)
    y = jnp.dot(x_big, w_ref[...], preferred_element_type=jnp.float32)

    # f32 elementwise add (v5e-safe); lane-dense store (d_model % 128 == 0).
    o_ref[...] = (y + pe_ref[...].astype(jnp.float32)).astype(o_ref.dtype)


# ---------------------------------------------------------------------------
# Block-batch chooser + wrapper
# ---------------------------------------------------------------------------
def _choose_block_batch(B, L, c_in, d_model, out_itemsize, w_itemsize,
                        target_rows=512, vmem_budget=24 * 2**20):
    """Batch elements folded per grid step.

    Targets >= target_rows lane-dense output rows per step (amortizes the per-step
    overhead and fills the MXU), keeps the grid length >= 2 so a v7x megacore can
    shard the parallel batch axis, keeps blocks sublane-aligned, and keeps the
    double-buffered working set inside a conservative VMEM budget (sized for v7x's
    64 MiB physical / 32 MiB default scoped VMEM)."""
    def vmem_bytes(bt):
        rows = bt * L
        lane_pad = 128 * 4                                   # c_in / marks pad to 128 lanes
        io = 2 * rows * (2 * lane_pad + d_model * out_itemsize)
        invariants = 2 * ((3 * c_in + _N_TABLE_ROWS) * d_model * w_itemsize
                          + rows * d_model * 4)
        return io + invariants

    cands = [bt for bt in range(1, B + 1)
             if B % bt == 0 and ((bt * L) % 8 == 0 or bt == B)
             and vmem_bytes(bt) <= vmem_budget]
    if not cands:
        return B
    multi = [bt for bt in cands if B // bt >= 2] or cands    # keep both v7x TCs busy
    hit = [bt for bt in multi if bt * L >= target_rows]
    pool = hit or multi
    # Smallest tile that reaches the target (else the largest below it); prefer an
    # even grid length as a tie-break.
    return min(pool, key=lambda bt: (bt * L if hit else -(bt * L), (B // bt) % 2))


def data_embedding_pallas(x, x_mark, w_big, pe, *, out_dtype=jnp.float32,
                          block_batch=None):
    """x: (B, L, c_in) f32; x_mark: (B, L, 4) int marks (year, month, day, weekday);
    w_big: (3*c_in + 62, d_model) fused conv taps + temporal tables;
    pe: (>=L, d_model) positional table. Returns (B, L, d_model) in out_dtype."""
    B, L, c_in = x.shape
    d_model = w_big.shape[-1]
    out_dtype = jnp.dtype(out_dtype)

    bt = block_batch or _choose_block_batch(
        B, L, c_in, d_model, out_dtype.itemsize, jnp.dtype(w_big.dtype).itemsize)
    rows = bt * L
    grid = B // bt

    # Flatten to lane-dense 2-D row-major streams (free metadata reshapes at the XLA
    # level) and pre-add the per-field table offsets to the marks.
    x2 = x.reshape(B * L, c_in).astype(jnp.float32)
    marks = (x_mark[..., :4].astype(jnp.int32)
             + jnp.asarray(_FIELD_OFFSETS, jnp.int32)).reshape(B * L, 4)
    pe_block = jnp.tile(pe[:L].astype(jnp.float32), (bt, 1))          # (rows, d_model)

    vmem_limit = int(min(max(
        2 * rows * (2 * 128 * 4 + d_model * out_dtype.itemsize)
        + 2 * (w_big.shape[0] * d_model * 4 + rows * d_model * 4) + 8 * 2**20,
        32 * 2**20), 48 * 2**20))

    out2 = pl.pallas_call(
        partial(_data_embedding_kernel, seq_len=L),
        out_shape=jax.ShapeDtypeStruct((B * L, d_model), out_dtype),
        grid_spec=pltpu.PrefetchScalarGridSpec(
            num_scalar_prefetch=0,
            grid=(grid,),
            in_specs=[
                pl.BlockSpec((rows, c_in), lambda g: (g, 0)),
                pl.BlockSpec((rows, 4), lambda g: (g, 0)),
                # Grid-invariant blocks (constant index_map): DMA'd once, VMEM-resident.
                pl.BlockSpec(w_big.shape, lambda g: (0, 0)),
                pl.BlockSpec((rows, d_model), lambda g: (0, 0)),
            ],
            out_specs=pl.BlockSpec((rows, d_model), lambda g: (g, 0)),
        ),
        compiler_params=pltpu.CompilerParams(
            # Even-length parallel batch grid -> both v7x TensorCores busy
            # (no-op on single-TC v5e/v6e).
            dimension_semantics=("parallel",),
            vmem_limit_bytes=vmem_limit,
        ),
    )(x2, marks, w_big, pe_block)
    return out2.reshape(B, L, d_model)


# ---------------------------------------------------------------------------
# Parameter / buffer construction (deterministic, matches torch __init__ shapes)
# ---------------------------------------------------------------------------
def sinusoid_table(n_pos, d_model):
    pos = jnp.arange(n_pos, dtype=jnp.float32)[:, None]
    div = jnp.exp(jnp.arange(0, d_model, 2, dtype=jnp.float32)
                  * -(math.log(10000.0) / d_model))
    tab = jnp.zeros((n_pos, d_model), jnp.float32)
    tab = tab.at[:, 0::2].set(jnp.sin(pos * div))
    tab = tab.at[:, 1::2].set(jnp.cos(pos * div)[:, : d_model // 2])  # odd-d_model safe
    return tab


def make_params(key, c_in, d_model, max_len=5000):
    # TokenEmbedding conv weight: torch shape (d_model, c_in, 3), kaiming_normal
    # fan_in, leaky_relu gain.
    std = math.sqrt(2.0 / (1.0 + 0.01 ** 2)) / math.sqrt(c_in * 3)
    w_torch = std * jax.random.normal(key, (d_model, c_in, 3), dtype=jnp.float32)
    # Conv taps stacked along the contraction dim: [W(k=0); W(k=1); W(k=2)] matching
    # x_big columns [x_prev | x | x_next].
    w_cat = jnp.transpose(w_torch, (2, 1, 0)).reshape(3 * c_in, d_model)
    # PositionalEmbedding buffer + fixed temporal tables (year, month, day, weekday).
    pe = sinusoid_table(max_len, d_model)
    tables = [sinusoid_table(n, d_model) for n in _FIELD_SIZES]
    # Single fused weight: conv taps + temporal tables -> one MXU pass (K = 3*c_in + 62).
    w_big = jnp.concatenate([w_cat] + tables, axis=0)
    return w_torch, w_big, pe, tables


# ---------------------------------------------------------------------------
# Pure-JAX reference (correctness check for the kernel)
# ---------------------------------------------------------------------------
def reference_forward(x, x_mark, w_torch, pe, tables):
    B, L, _ = x.shape
    xp = jnp.transpose(x, (0, 2, 1))                                    # (B, c_in, L)
    xpad = jnp.concatenate([xp[:, :, -1:], xp, xp[:, :, :1]], axis=2)   # circular pad
    conv = lax.conv_general_dilated(
        xpad, w_torch, window_strides=(1,), padding="VALID",
        dimension_numbers=("NCH", "OIH", "NCH"))                        # (B, d_model, L)
    value = jnp.transpose(conv, (0, 2, 1))                              # (B, L, d_model)
    year_t, month_t, day_t, weekday_t = tables
    xm = x_mark.astype(jnp.int32)
    temporal = (weekday_t[xm[:, :, 3]] + day_t[xm[:, :, 2]]
                + month_t[xm[:, :, 1]] + year_t[xm[:, :, 0]])
    return value + temporal + pe[:L][None]


# ---------------------------------------------------------------------------
if __name__ == "__main__":
    # Small demo shapes. d_model is a multiple of 128 (lane-dense stores); B=4 -> the
    # wrapper folds 2 batch elements per step giving an even, length-2 parallel grid.
    B, L, c_in, d_model = 4, 8, 4, 128

    key = jax.random.PRNGKey(0)
    k_w, k_x, k_y, k_m, k_d, k_wd = jax.random.split(key, 6)

    w_torch, w_big, pe, tables = make_params(k_w, c_in, d_model)

    x = jax.random.normal(k_x, (B, L, c_in), dtype=jnp.float32)
    x_mark = jnp.stack(
        [
            jax.random.randint(k_y, (B, L), 0, 10),   # year
            jax.random.randint(k_m, (B, L), 0, 13),   # month
            jax.random.randint(k_d, (B, L), 0, 32),   # day
            jax.random.randint(k_wd, (B, L), 0, 7),   # weekday
        ],
        axis=-1,
    ).astype(jnp.int32)                               # (B, L, 4)

    ref = reference_forward(x, x_mark, w_torch, pe, tables)

    # f32 weights + f32 output: exact parity with the module semantics.
    out = data_embedding_pallas(x, x_mark, w_big, pe)
    out = jax.block_until_ready(out)
    assert out.shape == (B, L, d_model)
    assert jnp.allclose(out, ref, atol=1e-4, rtol=1e-4)

    # bf16 MXU weights + bf16 output store: HBM traffic is ~95% the output write, so
    # the bf16 store halves the dominant stream (biggest win on bandwidth-poor v5e).
    # Accumulation and the positional add stay f32 (v5e-safe).
    out_bf16 = data_embedding_pallas(x, x_mark, w_big.astype(jnp.bfloat16), pe,
                                     out_dtype=jnp.bfloat16)
    out_bf16 = jax.block_until_ready(out_bf16)
    assert jnp.allclose(out_bf16.astype(jnp.float32), ref, atol=6e-2, rtol=6e-2)

    print("KERNEL_OK")
</pallas_src>

<mosaic_0001>
module attributes {stable_mosaic.version = 11 : i64} {
  func.func @_data_embedding_kernel(%arg0: i32, %arg1: memref<16x4xf32, #tpu.memory_space<vmem>>, %arg2: memref<16x4xi32, #tpu.memory_space<vmem>>, %arg3: memref<74x128xf32, #tpu.memory_space<vmem>>, %arg4: memref<16x128xf32, #tpu.memory_space<vmem>>, %arg5: memref<16x128xf32, #tpu.memory_space<vmem>>) attributes {dimension_semantics = [#tpu.dimension_semantics<parallel>], iteration_bounds = array<i64: 2>, scalar_prefetch = 0 : i64, scratch_operands = 0 : i64, tpu.core_type = #tpu.core_type<tc>, window_params = [{transform_indices = @transform_0, window_bounds = array<i64: 16, 4>}, {transform_indices = @transform_1, window_bounds = array<i64: 16, 4>}, {pipeline_mode = #tpu.pipeline_mode<synchronous>, transform_indices = @transform_2, window_bounds = array<i64: 74, 128>}, {pipeline_mode = #tpu.pipeline_mode<synchronous>, transform_indices = @transform_3, window_bounds = array<i64: 16, 128>}, {transform_indices = @transform_4, window_bounds = array<i64: 16, 128>}]} {
    %c0 = arith.constant 0 : index
    %c0_0 = arith.constant 0 : index
    %0 = vector.load %arg1[%c0, %c0_0] : memref<16x4xf32, #tpu.memory_space<vmem>>, vector<16x4xf32>
    %c1_i32 = arith.constant 1 : i32
    %1 = tpu.dynamic_rotate %0 by %c1_i32 dim 0 : vector<16x4xf32>, i32 -> vector<16x4xf32>
    %c15_i32 = arith.constant 15 : i32
    %2 = tpu.dynamic_rotate %0 by %c15_i32 dim 0 : vector<16x4xf32>, i32 -> vector<16x4xf32>
    %c9_i32 = arith.constant 9 : i32
    %3 = tpu.dynamic_rotate %0 by %c9_i32 dim 0 : vector<16x4xf32>, i32 -> vector<16x4xf32>
    %c7_i32 = arith.constant 7 : i32
    %4 = tpu.dynamic_rotate %0 by %c7_i32 dim 0 : vector<16x4xf32>, i32 -> vector<16x4xf32>
    %5 = tpu.iota {dimensions = array<i32: 0>} : vector<16x4xi32>
    %c8_i32 = arith.constant 8 : i32
    %c0_i32 = arith.constant 0 : i32
    %6 = arith.cmpi eq, %c8_i32, %c0_i32 : i32
    %c1_i32_1 = arith.constant 1 : i32
    %7 = arith.select %6, %c1_i32_1, %c8_i32 : i32
    %8 = vector.broadcast %7 : i32 to vector<16x4xi32>
    %9 = arith.remsi %5, %8 : vector<16x4xi32>
    %c0_i32_2 = arith.constant 0 : i32
    %10 = vector.broadcast %c0_i32_2 : i32 to vector<16x4xi32>
    %11 = arith.cmpi ne, %9, %10 : vector<16x4xi32>
    %c0_i32_3 = arith.constant 0 : i32
    %12 = vector.broadcast %c0_i32_3 : i32 to vector<16x4xi32>
    %13 = arith.cmpi slt, %9, %12 : vector<16x4xi32>
    %c0_i32_4 = arith.constant 0 : i32
    %14 = arith.cmpi slt, %7, %c0_i32_4 : i32
    %15 = vector.broadcast %14 : i1 to vector<16x4xi1>
    %16 = vector.broadcast %15 : vector<16x4xi1> to vector<16x4xi1>
    %17 = arith.xori %13, %16 : vector<16x4xi1>
    %18 = arith.andi %17, %11 : vector<16x4xi1>
    %19 = vector.broadcast %7 : i32 to vector<16x4xi32>
    %20 = arith.addi %9, %19 : vector<16x4xi32>
    %21 = arith.select %18, %20, %9 : vector<16x4xi1>, vector<16x4xi32>
    %c0_i32_5 = arith.constant 0 : i32
    %22 = vector.broadcast %c0_i32_5 : i32 to vector<16x4xi32>
    %23 = arith.cmpi eq, %21, %22 : vector<16x4xi32>
    %24 = arith.select %23, %3, %1 : vector<16x4xi1>, vector<16x4xf32>
    %c7_i32_6 = arith.constant 7 : i32
    %25 = vector.broadcast %c7_i32_6 : i32 to vector<16x4xi32>
    %26 = arith.cmpi eq, %21, %25 : vector<16x4xi32>
    %27 = arith.select %26, %4, %2 : vector<16x4xi1>, vector<16x4xf32>
    %c0_7 = arith.constant 0 : index
    %c0_8 = arith.constant 0 : index
    %28 = vector.load %arg2[%c0_7, %c0_8] : memref<16x4xi32, #tpu.memory_space<vmem>>, vector<16x4xi32>
    %29 = tpu.iota {dimensions = array<i32: 1>} : vector<16x62xi32>
    %cst = arith.constant 0.000000e+00 : f32
    %30 = vector.broadcast %cst : f32 to vector<16x62xf32>
    %31 = vector.extract_strided_slice %28 {offsets = [0, 0], sizes = [16, 1], strides = [1, 1]} : vector<16x4xi32> to vector<16x1xi32>
    %32 = vector.broadcast %31 : vector<16x1xi32> to vector<16x62xi32>
    %33 = arith.cmpi eq, %32, %29 : vector<16x62xi32>
    %34 = arith.extui %33 : vector<16x62xi1> to vector<16x62xi32>
    %35 = arith.sitofp %34 : vector<16x62xi32> to vector<16x62xf32>
    %36 = arith.addf %30, %35 : vector<16x62xf32>
    %37 = vector.extract_strided_slice %28 {offsets = [0, 1], sizes = [16, 1], strides = [1, 1]} : vector<16x4xi32> to vector<16x1xi32>
    %38 = vector.broadcast %37 : vector<16x1xi32> to vector<16x62xi32>
    %39 = arith.cmpi eq, %38, %29 : vector<16x62xi32>
    %40 = arith.extui %39 : vector<16x62xi1> to vector<16x62xi32>
    %41 = arith.sitofp %40 : vector<16x62xi32> to vector<16x62xf32>
    %42 = arith.addf %36, %41 : vector<16x62xf32>
    %43 = vector.extract_strided_slice %28 {offsets = [0, 2], sizes = [16, 1], strides = [1, 1]} : vector<16x4xi32> to vector<16x1xi32>
    %44 = vector.broadcast %43 : vector<16x1xi32> to vector<16x62xi32>
    %45 = arith.cmpi eq, %44, %29 : vector<16x62xi32>
    %46 = arith.extui %45 : vector<16x62xi1> to vector<16x62xi32>
    %47 = arith.sitofp %46 : vector<16x62xi32> to vector<16x62xf32>
    %48 = arith.addf %42, %47 : vector<16x62xf32>
    %49 = vector.extract_strided_slice %28 {offsets = [0, 3], sizes = [16, 1], strides = [1, 1]} : vector<16x4xi32> to vector<16x1xi32>
    %50 = vector.broadcast %49 : vector<16x1xi32> to vector<16x62xi32>
    %51 = arith.cmpi eq, %50, %29 : vector<16x62xi32>
    %52 = arith.extui %51 : vector<16x62xi1> to vector<16x62xi32>
    %53 = arith.sitofp %52 : vector<16x62xi32> to vector<16x62xf32>
    %54 = arith.addf %48, %53 : vector<16x62xf32>
    %55 = tpu.concatenate %24, %0, %27, %54 in 1 : vector<16x4xf32>, vector<16x4xf32>, vector<16x4xf32>, vector<16x62xf32> -> vector<16x74xf32>
    %c0_9 = arith.constant 0 : index
    %c0_10 = arith.constant 0 : index
    %56 = vector.load %arg3[%c0_9, %c0_10] : memref<74x128xf32, #tpu.memory_space<vmem>>, vector<74x128xf32>
    %cst_11 = arith.constant dense<0.000000e+00> : vector<16x128xf32>
    %57 = tpu.matmul %55, %56, %cst_11 {dimension_numbers = #tpu.dot_dimension_numbers<[1], [0], [0], [1], [0, 0, 1, 1], [], []>} : vector<16x74xf32>, vector<74x128xf32>, vector<16x128xf32> -> vector<16x128xf32>
    %c0_12 = arith.constant 0 : index
    %c0_13 = arith.constant 0 : index
    %58 = vector.load %arg4[%c0_12, %c0_13] : memref<16x128xf32, #tpu.memory_space<vmem>>, vector<16x128xf32>
    %59 = arith.addf %57, %58 : vector<16x128xf32>
    %c0_14 = arith.constant 0 : index
    %c0_15 = arith.constant 0 : index
    %60 = vector.load %arg5[%c0_14, %c0_15] : memref<16x128xf32, #tpu.memory_space<vmem>>, vector<16x128xf32>
    tpu.vector_store %arg5[%c0_14, %c0_15], %59 {strides = array<i32>} : memref<16x128xf32, #tpu.memory_space<vmem>>, vector<16x128xf32>,
    return
  }
  func.func @transform_0(%arg0: i32) -> (i32, i32) {
    %c0_i32 = arith.constant 0 : i32
    %c0_i32_0 = arith.constant 0 : i32
    return %arg0, %c0_i32 : i32, i32
  }
  func.func @transform_1(%arg0: i32) -> (i32, i32) {
    %c0_i32 = arith.constant 0 : i32
    %c0_i32_0 = arith.constant 0 : i32
    return %arg0, %c0_i32 : i32, i32
  }
  func.func @transform_2(%arg0: i32) -> (i32, i32) {
    %c0_i32 = arith.constant 0 : i32
    %c0_i32_0 = arith.constant 0 : i32
    %c0_i32_1 = arith.constant 0 : i32
    return %c0_i32, %c0_i32_0 : i32, i32
  }
  func.func @transform_3(%arg0: i32) -> (i32, i32) {
    %c0_i32 = arith.constant 0 : i32
    %c0_i32_0 = arith.constant 0 : i32
    %c0_i32_1 = arith.constant 0 : i32
    return %c0_i32, %c0_i32_0 : i32, i32
  }
  func.func @transform_4(%arg0: i32) -> (i32, i32) {
    %c0_i32 = arith.constant 0 : i32
    %c0_i32_0 = arith.constant 0 : i32
    return %arg0, %c0_i32 : i32, i32
  }
}

</mosaic_0001>

<llo_original>
// kernel: tpu_custom_call.1
$region0: #{tpu_custom_call.1}
  #allocation0 [shape = 'u32[]', space=smem, size = 0x4, offset = 0x4, fixed_abs, tag = 'smem constant byte address 0x4 - core index']
  #allocation1 [shape = 'u32[144,128]{1,0:T(1,128)}', space=vmem, size = 0x12000, scoped, tag = 'internal scratch']
  %s0 = inlined_call_operand.vmem [shape: f32[32,4], index: 0, kind: input, shape index: {}]
  %s1 = inlined_call_operand.vmem [shape: s32[32,4], index: 1, kind: input, shape index: {}]
  %s2 = inlined_call_operand.hbm [shape: f32[74,128], index: 2, kind: input, shape index: {}]
  %s3 = inlined_call_operand.vmem [shape: f32[16,128], index: 3, kind: input, shape index: {}]
  %s4 = inlined_call_operand.hbm [shape: f32[32,128], index: 4, kind: output, shape index: {}]
  %s5 = sld [smem:[#allocation0]]
  $region53: #{tpu_custom_call.1} parent=0
    _
  %s7 = ssub.s32 1, %s5
  %s8 = scalar_select 0, %s7, %s5
  $region1: #{tpu_custom_call.1} parent=0
    #allocation2 [shape = 'u8[40960]{0}', space=vmem, size = 0xa000, scoped, tag = 'input window, operand 2, single buffered']
    #allocation3 [shape = 's32[2]{0}', space=sflag, size = 0x8, scoped, tag = 'scoped memory for tpu_custom_call.1']
    #allocation4 [shape = 's32[2]{0}', space=sflag, size = 0x8, scoped, tag = 'scoped memory for tpu_custom_call.1']
    #allocation5 [shape = 'u8[16384]{0}', space=vmem, size = 0x4000, scoped, tag = 'output window, operand 0']
    %9 = vsyncpa [#allocation3], 0
    %10 = vsyncpa [#allocation4], 0
    %s11 = scalar_lea.sflag [#allocation4], 1
    %12 = vsyncpa %s11, 0
    loop: start=0, step=1, limit=4
    $region2: #{tpu_custom_call.1} parent=1 // loop_pre_header
      _
    $region3: #{tpu_custom_call.1} parent=1 // loop_header
      %s14 = sphi 0, %s18
      %p15 = scmp.ge.s32.totalorder %s14, 4
      %s24 = sphi 0, %s26
      %s27 = sphi 0, %s24
      %s28 = sphi 0, %s27
      %s44 = sphi 0, %s28
      %s50 = sphi 0, %s52
      %s53 = sphi 0, %s50
      %s54 = sphi 0, %s53
      %s70 = sphi 0, %s54
      %s74 = sphi 0, %s74
      %s76 = sphi 0, %s74
      %s77 = sphi 0, %s76
      %s91 = sphi 0, %s77
      %s95 = sphi 0, %s95
      %s97 = sphi 0, %s95
      %s98 = sphi 0, %s97
      %s112 = sphi 0, %s98
      %s118 = sphi 0, %s120
      %s121 = sphi 0, %s118
      %s122 = sphi 0, %s121
      %s138 = sphi 0, %s122
    $region4: #{tpu_custom_call.1} parent=1 // loop_header_branch
      %17 = sbr.rel (%p15) target = $region8
    $region5: #{tpu_custom_call.1} parent=1 // loop_body
      %s19 = ssub.s32 %s14, 1
      %s20 = ssub.s32 %s14, 2
      %s21 = sadd.s32 %s14, 1
      %s22 = ssub.s32 %s14, %s21
      %p23 = scmp.eq.s32.totalorder %s22, 0
      %s25 = sadd.s32 %s24, 1
      %s26 = scalar_select %p23, %s24, %s25
      %p29 = pneg %p23
      %p30 = scmp.eq.s32.totalorder %s14, 1
      %p31 = por %p29, %p30
      %p32 = scmp.ne.s32.totalorder %s24, %s27
      %p33 = scmp.eq.s32.totalorder %s14, 0
      %p34 = por %p32, %p33
      %p35 = scmp.ne.s32.totalorder %s24, %s27
      %p36 = scmp.eq.s32.totalorder %s19, 1
      %p37 = por %p35, %p36
      %p38 = scmp.ne.s32.totalorder %s27, %s28
      %p39 = scmp.eq.s32.totalorder %s19, 0
      %p40 = por %p38, %p39
      %p41 = scmp.ne.s32.totalorder %s27, %s28
      %p42 = scmp.eq.s32.totalorder %s20, 1
      %p43 = por %p41, %p42
      %p45 = scmp.ne.s32.totalorder %s28, %s44
      %p46 = scmp.eq.s32.totalorder %s20, 0
      %p47 = por %p45, %p46
      %s48 = ssub.s32 %s14, %s21
      %p49 = scmp.eq.s32.totalorder %s48, 0
      %s51 = sadd.s32 %s50, 1
      %s52 = scalar_select %p49, %s50, %s51
      %p55 = pneg %p49
      %p56 = scmp.eq.s32.totalorder %s14, 1
      %p57 = por %p55, %p56
      %p58 = scmp.ne.s32.totalorder %s50, %s53
      %p59 = scmp.eq.s32.totalorder %s14, 0
      %p60 = por %p58, %p59
      %p61 = scmp.ne.s32.totalorder %s50, %s53
      %p62 = scmp.eq.s32.totalorder %s19, 1
      %p63 = por %p61, %p62
      %p64 = scmp.ne.s32.totalorder %s53, %s54
      %p65 = scmp.eq.s32.totalorder %s19, 0
      %p66 = por %p64, %p65
      %p67 = scmp.ne.s32.totalorder %s53, %s54
      %p68 = scmp.eq.s32.totalorder %s20, 1
      %p69 = por %p67, %p68
      %p71 = scmp.ne.s32.totalorder %s54, %s70
      %p72 = scmp.eq.s32.totalorder %s20, 0
      %p73 = por %p71, %p72
      %s75 = sadd.s32 %s74, 1
      %p78 = scmp.eq.s32.totalorder %s14, 1
      %p79 = scmp.ne.s32.totalorder %s74, %s76
      %p80 = scmp.eq.s32.totalorder %s14, 0
      %p81 = por %p79, %p80
      %p82 = scmp.ne.s32.totalorder %s74, %s76
      %p83 = scmp.eq.s32.totalorder %s19, 1
      %p84 = por %p82, %p83
      %p85 = scmp.ne.s32.totalorder %s76, %s77
      %p86 = scmp.eq.s32.totalorder %s19, 0
      %p87 = por %p85, %p86
      %p88 = scmp.ne.s32.totalorder %s76, %s77
      %p89 = scmp.eq.s32.totalorder %s20, 1
      %p90 = por %p88, %p89
      %p92 = scmp.ne.s32.totalorder %s77, %s91
      %p93 = scmp.eq.s32.totalorder %s20, 0
      %p94 = por %p92, %p93
      %s96 = sadd.s32 %s95, 1
      %p99 = scmp.eq.s32.totalorder %s14, 1
      %p100 = scmp.ne.s32.totalorder %s95, %s97
      %p101 = scmp.eq.s32.totalorder %s14, 0
      %p102 = por %p100, %p101
      %p103 = scmp.ne.s32.totalorder %s95, %s97
      %p104 = scmp.eq.s32.totalorder %s19, 1
      %p105 = por %p103, %p104
      %p106 = scmp.ne.s32.totalorder %s97, %s98
      %p107 = scmp.eq.s32.totalorder %s19, 0
      %p108 = por %p106, %p107
      %p109 = scmp.ne.s32.totalorder %s97, %s98
      %p110 = scmp.eq.s32.totalorder %s20, 1
      %p111 = por %p109, %p110
      %p113 = scmp.ne.s32.totalorder %s98, %s112
      %p114 = scmp.eq.s32.totalorder %s20, 0
      %p115 = por %p113, %p114
      %s116 = ssub.s32 %s14, %s21
      %p117 = scmp.eq.s32.totalorder %s116, 0
      %s119 = sadd.s32 %s118, 1
      %s120 = scalar_select %p117, %s118, %s119
      %p123 = pneg %p117
      %p124 = scmp.eq.s32.totalorder %s14, 1
      %p125 = por %p123, %p124
      %p126 = scmp.ne.s32.totalorder %s118, %s121
      %p127 = scmp.eq.s32.totalorder %s14, 0
      %p128 = por %p126, %p127
      %p129 = scmp.ne.s32.totalorder %s118, %s121
      %p130 = scmp.eq.s32.totalorder %s19, 1
      %p131 = por %p129, %p130
      %p132 = scmp.ne.s32.totalorder %s121, %s122
      %p133 = scmp.eq.s32.totalorder %s19, 0
      %p134 = por %p132, %p133
      %p135 = scmp.ne.s32.totalorder %s121, %s122
      %p136 = scmp.eq.s32.totalorder %s20, 1
      %p137 = por %p135, %p136
      %p139 = scmp.ne.s32.totalorder %s122, %s138
      %p140 = scmp.eq.s32.totalorder %s20, 0
      %p141 = por %p139, %p140
      %p142 = scmp.le.s32.totalorder 1, %s14
      %p143 = scmp.lt.s32.totalorder %s14, 3
      %p144 = pnand %p142, %p143
      %p145 = pneg %p144
      // Predicated region
      $region9: #{tpu_custom_call.1} parent=5 // pred_check
        _
      $region10: #{tpu_custom_call.1} parent=5 // pred_check_branch
        %147 = sbr.rel (%p144) target = $region12
      $region11: #{tpu_custom_call.1} parent=5 // pred_region
        %s148 = ssub.s32 %s14, 1
        // Predicated region
        $region13: #{tpu_custom_call.1} parent=11 // pred_check
          %p149 = pneg %p87
        $region14: #{tpu_custom_call.1} parent=11 // pred_check_branch
          %151 = sbr.rel (%p149) target = $region16
        $region15: #{tpu_custom_call.1} parent=11 // pred_region
          %s153 = ssub.s32 1280, 1280
          %154 = vsyncadd [#allocation3], %s153
          %s155 = sshll.u32 [#allocation2], 4
          %s156 = int_to_ptr.vmem [resolvable:$true] %s155
          %161 = dma.hbm_to_vmem [thread:$0]  %s2, 1280, %s156, [#allocation3], 128, 128, 8
        $region16: #{tpu_custom_call.1} parent=11 // pred_fallthru
          _
        // Predicated region
        $region17: #{tpu_custom_call.1} parent=11 // pred_check
          %p162 = pneg %p108
        $region18: #{tpu_custom_call.1} parent=11 // pred_check_branch
          %164 = sbr.rel (%p162) target = $region20
        $region19: #{tpu_custom_call.1} parent=11 // pred_region
          _
        $region20: #{tpu_custom_call.1} parent=11 // pred_fallthru
          _
      $region12: #{tpu_custom_call.1} parent=5 // pred_fallthru
        _
      %p165 = scmp.lt.s32.totalorder %s14, 2
      // Predicated region
      $region21: #{tpu_custom_call.1} parent=5 // pred_check
        %p166 = pneg %p165
      $region22: #{tpu_custom_call.1} parent=5 // pred_check_branch
        %168 = sbr.rel (%p166) target = $region24
      $region23: #{tpu_custom_call.1} parent=5 // pred_region
        // Predicated region
        $region25: #{tpu_custom_call.1} parent=23 // pred_check
          %p169 = pneg %p34
        $region26: #{tpu_custom_call.1} parent=23 // pred_check_branch
          %171 = sbr.rel (%p169) target = $region28
        $region27: #{tpu_custom_call.1} parent=23 // pred_region
          %s172 = smul.u32 2, %s14
          %p173 = scmp.lt.s32.totalorder %s172, 3
          %s174 = scalar_select %p173, %s172, 3
          %s175 = smul.addr %s174, 8
          %s176 = scalar_lea.vmem %s0, %s175
          %s177 = smul.u32 2, %s14
        $region28: #{tpu_custom_call.1} parent=23 // pred_fallthru
          _
        // Predicated region
        $region29: #{tpu_custom_call.1} parent=23 // pred_check
          %p178 = pneg %p60
        $region30: #{tpu_custom_call.1} parent=23 // pred_check_branch
          %180 = sbr.rel (%p178) target = $region32
        $region31: #{tpu_custom_call.1} parent=23 // pred_region
          %s181 = smul.u32 2, %s14
          %p182 = scmp.lt.s32.totalorder %s181, 3
          %s183 = scalar_select %p182, %s181, 3
          %s184 = smul.addr %s183, 8
          %s185 = scalar_lea.vmem %s1, %s184
          %s186 = smul.u32 2, %s14
        $region32: #{tpu_custom_call.1} parent=23 // pred_fallthru
          _
      $region24: #{tpu_custom_call.1} parent=5 // pred_fallthru
        _
      %p187 = scmp.le.s32.totalorder 1, %s14
      %p188 = scmp.lt.s32.totalorder %s14, 3
      %p189 = pnand %p187, %p188
      %p190 = pneg %p189
      // Predicated region
      $region33: #{tpu_custom_call.1} parent=5 // pred_check
        _
      $region34: #{tpu_custom_call.1} parent=5 // pred_check_branch
        %192 = sbr.rel (%p189) target = $region36
      $region35: #{tpu_custom_call.1} parent=5 // pred_region
        %s193 = ssub.s32 %s14, 1
        // Predicated region
        $region37: #{tpu_custom_call.1} parent=35 // pred_check
          %p194 = pneg %p87
        $region38: #{tpu_custom_call.1} parent=35 // pred_check_branch
          %196 = sbr.rel (%p194) target = $region40
        $region39: #{tpu_custom_call.1} parent=35 // pred_region
          %197 = dma.done [#allocation3], 1280
        $region40: #{tpu_custom_call.1} parent=35 // pred_fallthru
          _
        %s198 = smul.u32 2, %s19
        %p199 = scmp.lt.s32.totalorder %s198, 3
        %s200 = scalar_select %p199, %s198, 3
        %s201 = smul.addr %s200, 8
        %s202 = scalar_lea.vmem %s0, %s201
        %p203 = pneg %p40
        %p204 = pneg %p37
        %s205 = smul.u32 2, %s19
        %p206 = scmp.lt.s32.totalorder %s205, 3
        %s207 = scalar_select %p206, %s205, 3
        %s208 = smul.addr %s207, 8
        %s209 = scalar_lea.vmem %s1, %s208
        %p210 = pneg %p66
        %p211 = pneg %p63
        %p212 = pneg %p87
        %p213 = pneg %p84
        %p214 = pneg %p108
        %p215 = pneg %p105
        %p216 = pneg %p134
        %p217 = pneg %p131
        %s218 = sand.u32 %s121, 1
        %s219 = scalar_lea.sflag [#allocation4], %s218
        %s220 = sand.u32 %s121, 1
        %s221 = smul.addr %s220, 16
        %s222 = scalar_lea.vmem [#allocation5], %s221
        %s223 = smul.u32 2, %s19
        %p224 = scmp.lt.s32.totalorder %s223, 3
        %s225 = scalar_select %p224, %s223, 3
        %s226 = smul.addr %s225, 8
        %s227 = scalar_lea.vmem %s0, %s226
        %s228 = smul.u32 2, %s19
        %s229 = smul.u32 2, %s19
        %p230 = scmp.lt.s32.totalorder %s229, 3
        %s231 = scalar_select %p230, %s229, 3
        %s232 = smul.addr %s231, 8
        %s233 = scalar_lea.vmem %s1, %s232
        %s234 = smul.u32 2, %s19
        %s235 = smul.u32 2, %s19
        %v236 = vld [vmem:[%s227] sm:$0xff]
        %v237 = vld [vmem:[%s227 + $0x8] sm:$0xff]
        %v238 = vrot.slane %v236, 7
        %v239 = vrot.slane %v237, 7
        %v240 = vlaneseq
        %v241 = vshrl.u32 %v240, 7
        %vm242 = vcmp.lt.s32.totalorder %v241, 1
        %v243 = vsel %vm242, %v238, %v239
        %v244 = vsel %vm242, %v239, %v238
        %v245 = vrot.slane %v236, 1
        %v246 = vrot.slane %v237, 1
        %vm247 = vcmp.lt.s32.totalorder %v241, 7
        %v248 = vsel %vm247, %v245, %v246
        %v249 = vsel %vm247, %v246, %v245
        %v250 = vadd.s32 %v241, 8
        %vm251 = vcmp.lt.s32.totalorder %v241, 0
        %v252 = vsub.s32 0, %v241
        %v253 = vsel %vm251, %v252, %v241
        %v254 = vshrl.u32 %v253, 3
        %v255 = vand.u32 %v253, 7
        %v256 = vsub.s32 0, %v255
        %v257 = vsel %vm251, %v256, %v255
        %vm258 = vcmp.lt.s32.totalorder %v250, 0
        %v259 = vsub.s32 0, %v250
        %v260 = vsel %vm258, %v259, %v250
        %v261 = vshrl.u32 %v260, 3
        %v262 = vand.u32 %v260, 7
        %v263 = vsub.s32 0, %v262
        %v264 = vsel %vm258, %v263, %v262
        %vm265 = vcmp.ne.s32.totalorder %v257, 0
        %vm266 = vcmp.ne.s32.totalorder %v264, 0
        %vm267 = vcmp.lt.s32.totalorder %v257, 0
        %vm268 = vcmp.lt.s32.totalorder %v264, 0
        %vm269 = vmand %vm267, %vm265
        %vm270 = vmand %vm268, %vm266
        %v271 = vadd.s32 %v257, 8
        %v272 = vadd.s32 %v264, 8
        %v273 = vsel %vm269, %v271, %v257
        %v274 = vsel %vm270, %v272, %v264
        %vm275 = vcmp.eq.s32.totalorder %v273, 0
        %vm276 = vcmp.eq.s32.totalorder %v274, 0
        %v277 = vsel %vm275, %v243, %v244
        %v278 = vsel %vm276, %v244, %v243
        %vm279 = vcmp.eq.s32.totalorder %v273, 7
        %vm280 = vcmp.eq.s32.totalorder %v274, 7
        %v281 = vsel %vm279, %v249, %v248
        %v282 = vsel %vm280, %v248, %v249
        %v283 = vld [vmem:[%s233] sm:$0xff]
        %v284 = vld [vmem:[%s233 + $0x8] sm:$0xff]
        %v285 = vlaneseq
        %v286 = vand.u32 %v285, 127
        %287 = vset.pattern.permute.xlu0 0
        %288 = vperm.xlu0 %287, %v283
        %v289 = vpop.permute.xlu0 %288
        %290 = vset.pattern.permute.xlu0 0
        %291 = vperm.xlu0 %290, %v284
        %v292 = vpop.permute.xlu0 %291
        %vm293 = vcmp.eq.s32.totalorder %v289, %v286
        %vm294 = vcmp.eq.s32.totalorder %v292, %v286
        %v295 = vsel %vm293, 1, 0
        %v296 = vsel %vm294, 1, 0
        %v297 = vcvt.s32.f32 %v295
        %v298 = vcvt.s32.f32 %v296
        %v299 = vadd.f32 %v297, 0.0
        %v300 = vadd.f32 %v298, 0.0
        %301 = vset.pattern.permute.xlu0 1
        %302 = vperm.xlu0 %301, %v283
        %v303 = vpop.permute.xlu0 %302
        %304 = vset.pattern.permute.xlu0 1
        %305 = vperm.xlu0 %304, %v284
        %v306 = vpop.permute.xlu0 %305
        %vm307 = vcmp.eq.s32.totalorder %v303, %v286
        %vm308 = vcmp.eq.s32.totalorder %v306, %v286
        %v309 = vsel %vm307, 1, 0
        %v310 = vsel %vm308, 1, 0
        %v311 = vcvt.s32.f32 %v309
        %v312 = vcvt.s32.f32 %v310
        %v313 = vadd.f32 %v299, %v311
        %v314 = vadd.f32 %v300, %v312
        %315 = vset.pattern.permute.xlu0 2
        %316 = vperm.xlu0 %315, %v283
        %v317 = vpop.permute.xlu0 %316
        %318 = vset.pattern.permute.xlu0 2
        %319 = vperm.xlu0 %318, %v284
        %v320 = vpop.permute.xlu0 %319
        %vm321 = vcmp.eq.s32.totalorder %v317, %v286
        %vm322 = vcmp.eq.s32.totalorder %v320, %v286
        %v323 = vsel %vm321, 1, 0
        %v324 = vsel %vm322, 1, 0
        %v325 = vcvt.s32.f32 %v323
        %v326 = vcvt.s32.f32 %v324
        %v327 = vadd.f32 %v313, %v325
        %v328 = vadd.f32 %v314, %v326
        %329 = vset.pattern.permute.xlu0 3
        %330 = vperm.xlu0 %329, %v283
        %v331 = vpop.permute.xlu0 %330
        %332 = vset.pattern.permute.xlu0 3
        %333 = vperm.xlu0 %332, %v284
        %v334 = vpop.permute.xlu0 %333
        %vm335 = vcmp.eq.s32.totalorder %v331, %v286
        %vm336 = vcmp.eq.s32.totalorder %v334, %v286
        %v337 = vsel %vm335, 1, 0
        %v338 = vsel %vm336, 1, 0
        %v339 = vcvt.s32.f32 %v337
        %v340 = vcvt.s32.f32 %v338
        %v341 = vadd.f32 %v327, %v339
        %v342 = vadd.f32 %v328, %v340
        %345 = vrot.lane.b32.xlu0 %v236, 4
        %v346 = vpop.permute.xlu0 %345
        %347 = vrot.lane.b32.xlu0 %v237, 4
        %v348 = vpop.permute.xlu0 %347
        %353 = vrot.lane.b32.xlu0 %v281, 8
        %v354 = vpop.permute.xlu0 %353
        %355 = vrot.lane.b32.xlu0 %v282, 8
        %v356 = vpop.permute.xlu0 %355
        %361 = vrot.lane.b32.xlu0 %v341, 12
        %v362 = vpop.permute.xlu0 %361
        %363 = vrot.lane.b32.xlu0 %v342, 12
        %v364 = vpop.permute.xlu0 %363
        %vm367 = vcmask 31744
        %v368 = vsel %vm367, %v277, %v346
        %v369 = vsel %vm367, %v278, %v348
        %vm370 = vcmask 64512
        %v371 = vsel %vm370, %v368, %v354
        %v372 = vsel %vm370, %v369, %v356
        %vm373 = vcmask 97280
        %v374 = vsel %vm373, %v371, %v362
        %v375 = vsel %vm373, %v372, %v364
        %v376 = vld [vmem:[#allocation2] sm:$0xff]
        %v377 = vld [vmem:[#allocation2 + $0x8] sm:$0xff]
        %v378 = vld [vmem:[#allocation2 + $0x10] sm:$0xff]
        %v379 = vld [vmem:[#allocation2 + $0x18] sm:$0xff]
        %v380 = vld [vmem:[#allocation2 + $0x20] sm:$0xff]
        %v381 = vld [vmem:[#allocation2 + $0x28] sm:$0xff]
        %v382 = vld [vmem:[#allocation2 + $0x30] sm:$0xff]
        %v383 = vld [vmem:[#allocation2 + $0x38] sm:$0xff]
        %v384 = vld [vmem:[#allocation2 + $0x40] sm:$0xff]
        %v385 = vld [vmem:[#allocation2 + $0x48] sm:$0x3]
        %v386 = vld [vmem:[%s3] sm:$0xff]
        %v387 = vld [vmem:[%s3 + $0x8] sm:$0xff]
        %vm388 = vcmask 605184
        %v390 = vsel %vm388, %v374, 0
        %v393 = vsel %vm388, %v375, 0
        %vm395 = vcmask 1041408
        %v397 = vsel %vm395, %v385, 0
        %399 = vmatprep.subr.mxu0 0.0
        %400 = vmatpush1.msra.mxu0 0.0
        %401 = vmatprep.subr.mxu0 0.0
        %402 = vmatpush1.msra.mxu0 0.0
        %403 = vmatprep.subr.mxu0 0.0
        %404 = vmatpush1.msra.mxu0 0.0
        %405 = vmatprep.subr.mxu0 0.0
        %406 = vmatpush1.msra.mxu0 0.0
        %407 = vmatprep.subr.mxu0 0.0
        %408 = vmatpush1.msra.mxu0 0.0
        %409 = vmatprep.subr.mxu0 0.0
        %410 = vmatpush1.msra.mxu0 0.0
        %411 = vmatprep.subr.mxu0 0.0
        %412 = vmatpush1.msra.mxu0 %v397
        %413 = vmatprep.subr.mxu0 0.0
        %414 = vmatpush1.msra.mxu0 %v384
        %415 = vmatprep.subr.mxu0 0.0
        %416 = vmatpush1.msra.mxu0 %v383
        %417 = vmatprep.subr.mxu0 0.0
        %418 = vmatpush1.msra.mxu0 %v382
        %419 = vmatprep.subr.mxu0 0.0
        %420 = vmatpush1.msra.mxu0 %v381
        %421 = vmatprep.subr.mxu0 0.0
        %422 = vmatpush1.msra.mxu0 %v380
        %423 = vmatprep.subr.mxu0 0.0
        %424 = vmatpush1.msra.mxu0 %v379
        %425 = vmatprep.subr.mxu0 0.0
        %426 = vmatpush1.msra.mxu0 %v378
        %427 = vmatprep.subr.mxu0 0.0
        %428 = vmatpush1.msra.mxu0 %v377
        %429 = vmatprep.subr.mxu0 0.0
        %430 = vmatpush1.msra.mxu0 %v376
        %431 = vmatprep.subr.mxu0 0.0
        %432 = vmatpush2.msra.mxu0 0.0
        %433 = vmatprep.subr.mxu0 0.0
        %434 = vmatpush2.msra.mxu0 0.0
        %435 = vmatprep.subr.mxu0 0.0
        %436 = vmatpush2.msra.mxu0 0.0
        %437 = vmatprep.subr.mxu0 0.0
        %438 = vmatpush2.msra.mxu0 0.0
        %439 = vmatprep.subr.mxu0 0.0
        %440 = vmatpush2.msra.mxu0 0.0
        %441 = vmatprep.subr.mxu0 0.0
        %442 = vmatpush2.msra.mxu0 0.0
        %443 = vmatprep.subr.mxu0 0.0
        %444 = vmatpush2.msra.mxu0 0.0
        %445 = vmatprep.subr.mxu0 0.0
        %446 = vmatpush2.msra.mxu0 0.0
        %447 = vmatprep.subr.mxu0 0.0
        %448 = vmatpush2.msra.mxu0 0.0
        %449 = vmatprep.subr.mxu0 0.0
        %450 = vmatpush2.msra.mxu0 0.0
        %451 = vmatprep.subr.mxu0 0.0
        %452 = vmatpush2.msra.mxu0 0.0
        %453 = vmatprep.subr.mxu0 0.0
        %454 = vmatpush2.msra.mxu0 0.0
        %455 = vmatprep.subr.mxu0 0.0
        %456 = vmatpush2.msra.mxu0 0.0
        %457 = vmatprep.subr.mxu0 0.0
        %458 = vmatpush2.msra.mxu0 0.0
        %459 = vmatprep.subr.mxu0 0.0
        %460 = vmatpush2.msra.mxu0 0.0
        %461 = vmatprep.subr.mxu0 0.0
        %462 = vmatpush2.msra.mxu0 0.0
        %463 = vmatprep.mubr.f32.mxu0 0.0
        %464 = vmatmul.mubr.f32.gmra.mxu0 %v390
        %v465 = vpop.f32.mrf.mxu0
        %v466 = vadd.f32 %v386, %v465
        %v467 = vpop.f32.mrf.mxu0
        %468 = vmatprep.mubr.f32.mxu0 0.0
        %469 = vmatmul.mubr.f32.gmra.mxu0 %v393
        %v470 = vpop.f32.mrf.mxu0
        %v471 = vadd.f32 %v387, %v470
        %v472 = vpop.f32.mrf.mxu0
        %473 = vdwg.mxu0
        %474 = vst [vmem:[%s222] sm:$0xff] %v466
        %475 = vst [vmem:[%s222 + $0x8] sm:$0xff] %v471
        %s476 = sand.u32 %s121, 1
        %s477 = scalar_lea.sflag [#allocation4], %s476
        %s478 = sand.u32 %s121, 1
        %s479 = smul.addr %s478, 16
        %s480 = scalar_lea.vmem [#allocation5], %s479
        // Predicated region
        $region41: #{tpu_custom_call.1} parent=35 // pred_check
          %p481 = pneg %p131
        $region42: #{tpu_custom_call.1} parent=35 // pred_check_branch
          %483 = sbr.rel (%p481) target = $region44
        $region43: #{tpu_custom_call.1} parent=35 // pred_region
          %s484 = smul.u32 2, %s19
          %s486 = ssub.s32 256, 256
          %487 = vsyncadd %s477, %s486
          %s488 = smul.addr %s484, 128
          %s489 = scalar_lea.hbm %s4, %s488
          %s490 = sshll.u32 %s480, 4
          %s491 = int_to_ptr.vmem [resolvable:$true] %s490
          %496 = dma.vmem_to_hbm [thread:$0]  %s491, 256, %s489, %s477, 128, 128, 8
        $region44: #{tpu_custom_call.1} parent=35 // pred_fallthru
          _
      $region36: #{tpu_custom_call.1} parent=5 // pred_fallthru
        _
      %p497 = scmp.le.s32.totalorder 2, %s14
      // Predicated region
      $region45: #{tpu_custom_call.1} parent=5 // pred_check
        %p498 = pneg %p497
      $region46: #{tpu_custom_call.1} parent=5 // pred_check_branch
        %500 = sbr.rel (%p498) target = $region48
      $region47: #{tpu_custom_call.1} parent=5 // pred_region
        %s501 = ssub.s32 %s14, 2
        // Predicated region
        $region49: #{tpu_custom_call.1} parent=47 // pred_check
          %p502 = pneg %p137
        $region50: #{tpu_custom_call.1} parent=47 // pred_check_branch
          %504 = sbr.rel (%p502) target = $region52
        $region51: #{tpu_custom_call.1} parent=47 // pred_region
          %s505 = sand.u32 %s122, 1
          %s506 = scalar_lea.sflag [#allocation4], %s505
          %s507 = sand.u32 %s122, 1
          %s508 = smul.addr %s507, 16
          %s509 = scalar_lea.vmem [#allocation5], %s508
          %510 = dma.done %s506, 256
        $region52: #{tpu_custom_call.1} parent=47 // pred_fallthru
          _
      $region48: #{tpu_custom_call.1} parent=5 // pred_fallthru
        _
    $region6: #{tpu_custom_call.1} parent=1 // loop_footer
      %s18 = sadd.s32 1, %s14
    $region7: #{tpu_custom_call.1} parent=1 // loop_footer_branch
      %13 = sbr.rel target = $region3
    $region8: #{tpu_custom_call.1} parent=1 // loop_exit
      _
    %511 = vsyncpa [#allocation3], 1
    %s512 = scalar_lea.sflag [#allocation3], 1
    %513 = vsyncpa %s512, 1
    %514 = vsyncpa [#allocation4], 1
    %s515 = scalar_lea.sflag [#allocation4], 1
    %516 = vsyncpa %s515, 1

</llo_original>
